<compile_context>
chip_gen: v6e
topology: v6e:2x2x1
jax: 0.10.0
libtpu: 0.0.40
codegen_flags: <defaults>
</compile_context>

<pallas_src>
import jax
import jax.numpy as jnp
from jax.experimental import pallas as pl
from jax.experimental.pallas import tpu as pltpu

KERNEL_SIZE = 7


def spatial_attention_kernel(w_ref, x_ref, o_ref):
    # w_ref: (2, KERNEL_SIZE) f32 in SMEM (row 0 -> mean channel, row 1 -> max)
    # x_ref / o_ref: (TB, N, C) block in VMEM
    tb, n, _ = x_ref.shape
    half = KERNEL_SIZE // 2

    # Channel reductions in f32; keepdims keeps N on sublanes (no relayout).
    # The f32 slab is only live for these two reductions.
    xf = x_ref[...].astype(jnp.float32)
    avg = jnp.mean(xf, axis=-1, keepdims=True)        # (TB, N, 1)
    mx = jnp.max(xf, axis=-1, keepdims=True)          # (TB, N, 1)

    tok = jax.lax.broadcasted_iota(jnp.int32, (tb, n, 1), dimension=1)

    acc = jnp.zeros((tb, n, 1), jnp.float32)
    for t in range(KERNEL_SIZE):                      # static, unrolled taps
        off = t - half                                # source token offset
        # Combine the two conv input channels *before* the roll (roll is
        # linear), so each non-centre tap needs a single XLU roll.
        tap = w_ref[0, t] * avg + w_ref[1, t] * mx    # (TB, N, 1)
        if off == 0:
            acc = acc + tap                           # centre tap: no mask
        else:
            shift = (-off) % n                        # rolled[i] = tap[i + off]
            tap = pltpu.roll(tap, shift=shift, axis=1)
            src = tok + off
            valid = (src >= 0) & (src < n)            # Conv1d zero padding
            acc = acc + jnp.where(valid, tap, 0.0)

    attn = jax.nn.sigmoid(acc)                        # (TB, N, 1), EUP

    # Re-read the (still resident) input block: no full f32 copy stays live
    # across the conv.  Broadcast multiply over the lane (C) axis.
    o_ref[...] = (x_ref[...].astype(jnp.float32) * attn).astype(o_ref.dtype)


def _vmem_capacity_bytes():
    """Best-effort per-core VMEM capacity; conservative (v7x) fallback."""
    try:
        info = pltpu.get_tpu_info()
        for attr in ("vmem_capacity_bytes", "vmem_bytes", "vmem_size_bytes"):
            val = getattr(info, attr, None)
            if val:
                return int(val)
    except Exception:
        pass
    return 64 << 20


def _choose_block_b(B, per_batch_bytes, max_tile_bytes):
    """Batch rows per block: biggest tile <= max_tile_bytes, aim for >=4 steps."""
    tb = max(1, max_tile_bytes // max(per_batch_bytes, 1))
    if B >= 4:
        # Keep at least ~4 grid steps so each TensorCore (v7x has 2) gets a
        # multi-step, double-buffered stream under "parallel" semantics.
        tb = min(tb, pl.cdiv(B, 4))
    return min(tb, B)


def spatial_attention(x, w):
    """x: (B, N, C); w: (2, KERNEL_SIZE) Conv1d weight (out-channel dim dropped)."""
    B, N, C = x.shape
    itemsize = jnp.dtype(x.dtype).itemsize
    per_batch_bytes = N * C * itemsize

    vmem_cap = _vmem_capacity_bytes()
    # ~8 MiB blocks: per-step overhead <7% even at 3.2 TB/s HBM, while
    # 2 x (in + out) double buffers stay well inside 64 MiB VMEM.
    max_tile_bytes = max(2 << 20, min(8 << 20, vmem_cap // 8))

    tb = _choose_block_b(B, per_batch_bytes, max_tile_bytes)
    grid = (pl.cdiv(B, tb),)          # ragged last block allowed (masked store)

    tile_bytes = tb * per_batch_bytes
    vmem_limit = int(min(vmem_cap * 3 // 4, 6 * tile_bytes + (16 << 20)))
    vmem_limit = max(vmem_limit, 32 << 20)

    cost = pl.CostEstimate(
        flops=int(3 * B * N * C + 4 * KERNEL_SIZE * B * N),
        transcendentals=int(B * N),                      # sigmoid
        bytes_accessed=int(2 * B * N * C * itemsize),    # read x + write out
    )

    return pl.pallas_call(
        spatial_attention_kernel,
        out_shape=jax.ShapeDtypeStruct((B, N, C), x.dtype),
        grid=grid,
        in_specs=[
            pl.BlockSpec(memory_space=pltpu.MemorySpace.SMEM),   # conv weight
            pl.BlockSpec((tb, N, C), lambda b: (b, 0, 0)),       # x slab
        ],
        out_specs=pl.BlockSpec((tb, N, C), lambda b: (b, 0, 0)),
        compiler_params=pltpu.CompilerParams(
            dimension_semantics=("parallel",),
            vmem_limit_bytes=vmem_limit,
        ),
        cost_estimate=cost,
    )(w.astype(jnp.float32), x)


def spatial_attention_ref(x, w):
    """Pure-JAX reference mirroring the PyTorch forward."""
    B, N, C = x.shape
    xf = x.astype(jnp.float32)
    avg = jnp.mean(xf, axis=2, keepdims=True)            # (B, N, 1)
    mx = jnp.max(xf, axis=2, keepdims=True)              # (B, N, 1)
    a = jnp.concatenate([avg, mx], axis=2)               # (B, N, 2)
    a = jnp.transpose(a, (0, 2, 1))                      # (B, 2, N)
    half = KERNEL_SIZE // 2
    a_pad = jnp.pad(a, ((0, 0), (0, 0), (half, half)))   # Conv1d zero padding
    attn = jnp.zeros((B, N), jnp.float32)
    for t in range(KERNEL_SIZE):
        attn = attn + w[0, t] * a_pad[:, 0, t:t + N] + w[1, t] * a_pad[:, 1, t:t + N]
    attn = jax.nn.sigmoid(attn)
    return (xf * attn[:, :, None]).astype(x.dtype)


if __name__ == "__main__":
    key = jax.random.PRNGKey(0)
    kx, kw, kx2 = jax.random.split(key, 3)

    # Deterministic stand-in for nn.Conv1d(2, 1, 7, bias=False).weight of
    # shape (out=1, in=2, k=7); the leading out-channel dim is dropped.
    w = jax.random.normal(kw, (2, KERNEL_SIZE), dtype=jnp.float32) * 0.2

    # Small, lane-dense shapes (C multiple of 128 -> unmasked stores).
    B, N, C = 4, 32, 128
    x = jax.random.normal(kx, (B, N, C), dtype=jnp.float32)
    out = jax.block_until_ready(spatial_attention(x, w))
    ref = spatial_attention_ref(x, w)
    assert out.shape == (B, N, C)
    assert jnp.allclose(out, ref, atol=1e-5, rtol=1e-5), "mismatch vs reference (B=4)"

    # Ragged-batch case (B not a multiple of TB): exercises the cdiv grid with
    # a masked edge block.
    B2 = 5
    x2 = jax.random.normal(kx2, (B2, N, C), dtype=jnp.float32)
    out2 = jax.block_until_ready(spatial_attention(x2, w))
    ref2 = spatial_attention_ref(x2, w)
    assert out2.shape == (B2, N, C)
    assert jnp.allclose(out2, ref2, atol=1e-5, rtol=1e-5), "mismatch vs reference (B=5)"

    print("KERNEL_OK")
</pallas_src>

<mosaic_0001>
module attributes {stable_mosaic.version = 11 : i64} {
  func.func @spatial_attention_kernel(%arg0: i32, %arg1: memref<2x7xf32, #tpu.memory_space<smem>>, %arg2: memref<1x32x128xf32, #tpu.memory_space<vmem>>, %arg3: memref<1x32x128xf32, #tpu.memory_space<vmem>>) attributes {dimension_semantics = [#tpu.dimension_semantics<parallel>], iteration_bounds = array<i64: 4>, scalar_prefetch = 0 : i64, scratch_operands = 0 : i64, tpu.core_type = #tpu.core_type<tc>, window_params = [{transform_indices = @transform_0, window_bounds = array<i64: 2, 7>}, {transform_indices = @transform_1, window_bounds = array<i64: 1, 32, 128>}, {transform_indices = @transform_2, window_bounds = array<i64: 1, 32, 128>}]} {
    %c0 = arith.constant 0 : index
    %c0_0 = arith.constant 0 : index
    %c0_1 = arith.constant 0 : index
    %0 = vector.load %arg2[%c0, %c0_0, %c0_1] : memref<1x32x128xf32, #tpu.memory_space<vmem>>, vector<1x32x128xf32>
    %cst = arith.constant dense<0.000000e+00> : vector<1x32xf32>
    %1 = vector.multi_reduction <add>, %0, %cst [2] : vector<1x32x128xf32> to vector<1x32xf32>
    %2 = vector.shape_cast %1 : vector<1x32xf32> to vector<1x32x1xf32>
    %cst_2 = arith.constant 1.280000e+02 : f32
    %3 = vector.broadcast %cst_2 : f32 to vector<1x32x1xf32>
    %4 = arith.divf %2, %3 : vector<1x32x1xf32>
    %cst_3 = arith.constant dense<0xFF800000> : vector<1x32xf32>
    %5 = vector.multi_reduction <maximumf>, %0, %cst_3 [2] : vector<1x32x128xf32> to vector<1x32xf32>
    %6 = vector.shape_cast %5 : vector<1x32xf32> to vector<1x32x1xf32>
    %7 = tpu.iota {dimensions = array<i32: 1>} : vector<1x32x1xi32>
    %cst_4 = arith.constant 0.000000e+00 : f32
    %8 = vector.broadcast %cst_4 : f32 to vector<1x32x1xf32>
    %c0_5 = arith.constant 0 : index
    %c0_6 = arith.constant 0 : index
    %9 = memref.load %arg1[%c0_5, %c0_6] : memref<2x7xf32, #tpu.memory_space<smem>>
    %10 = vector.broadcast %9 : f32 to vector<1x32x1xf32>
    %11 = arith.mulf %10, %4 : vector<1x32x1xf32>
    %c1 = arith.constant 1 : index
    %c0_7 = arith.constant 0 : index
    %12 = memref.load %arg1[%c1, %c0_7] : memref<2x7xf32, #tpu.memory_space<smem>>
    %13 = vector.broadcast %12 : f32 to vector<1x32x1xf32>
    %14 = arith.mulf %13, %6 : vector<1x32x1xf32>
    %15 = arith.addf %11, %14 : vector<1x32x1xf32>
    %c3_i32 = arith.constant 3 : i32
    %16 = tpu.dynamic_rotate %15 by %c3_i32 dim 1 : vector<1x32x1xf32>, i32 -> vector<1x32x1xf32>
    %c-3_i32 = arith.constant -3 : i32
    %17 = vector.broadcast %c-3_i32 : i32 to vector<1x32x1xi32>
    %18 = arith.addi %7, %17 : vector<1x32x1xi32>
    %c0_i32 = arith.constant 0 : i32
    %19 = vector.broadcast %c0_i32 : i32 to vector<1x32x1xi32>
    %20 = arith.cmpi sge, %18, %19 : vector<1x32x1xi32>
    %c32_i32 = arith.constant 32 : i32
    %21 = vector.broadcast %c32_i32 : i32 to vector<1x32x1xi32>
    %22 = arith.cmpi slt, %18, %21 : vector<1x32x1xi32>
    %23 = arith.andi %20, %22 : vector<1x32x1xi1>
    %cst_8 = arith.constant 0.000000e+00 : f32
    %24 = vector.broadcast %cst_8 : f32 to vector<1x32x1xf32>
    %25 = arith.select %23, %16, %24 : vector<1x32x1xi1>, vector<1x32x1xf32>
    %26 = arith.addf %8, %25 : vector<1x32x1xf32>
    %c0_9 = arith.constant 0 : index
    %c1_10 = arith.constant 1 : index
    %27 = memref.load %arg1[%c0_9, %c1_10] : memref<2x7xf32, #tpu.memory_space<smem>>
    %28 = vector.broadcast %27 : f32 to vector<1x32x1xf32>
    %29 = arith.mulf %28, %4 : vector<1x32x1xf32>
    %c1_11 = arith.constant 1 : index
    %c1_12 = arith.constant 1 : index
    %30 = memref.load %arg1[%c1_11, %c1_12] : memref<2x7xf32, #tpu.memory_space<smem>>
    %31 = vector.broadcast %30 : f32 to vector<1x32x1xf32>
    %32 = arith.mulf %31, %6 : vector<1x32x1xf32>
    %33 = arith.addf %29, %32 : vector<1x32x1xf32>
    %c2_i32 = arith.constant 2 : i32
    %34 = tpu.dynamic_rotate %33 by %c2_i32 dim 1 : vector<1x32x1xf32>, i32 -> vector<1x32x1xf32>
    %c-2_i32 = arith.constant -2 : i32
    %35 = vector.broadcast %c-2_i32 : i32 to vector<1x32x1xi32>
    %36 = arith.addi %7, %35 : vector<1x32x1xi32>
    %c0_i32_13 = arith.constant 0 : i32
    %37 = vector.broadcast %c0_i32_13 : i32 to vector<1x32x1xi32>
    %38 = arith.cmpi sge, %36, %37 : vector<1x32x1xi32>
    %c32_i32_14 = arith.constant 32 : i32
    %39 = vector.broadcast %c32_i32_14 : i32 to vector<1x32x1xi32>
    %40 = arith.cmpi slt, %36, %39 : vector<1x32x1xi32>
    %41 = arith.andi %38, %40 : vector<1x32x1xi1>
    %cst_15 = arith.constant 0.000000e+00 : f32
    %42 = vector.broadcast %cst_15 : f32 to vector<1x32x1xf32>
    %43 = arith.select %41, %34, %42 : vector<1x32x1xi1>, vector<1x32x1xf32>
    %44 = arith.addf %26, %43 : vector<1x32x1xf32>
    %c0_16 = arith.constant 0 : index
    %c2 = arith.constant 2 : index
    %45 = memref.load %arg1[%c0_16, %c2] : memref<2x7xf32, #tpu.memory_space<smem>>
    %46 = vector.broadcast %45 : f32 to vector<1x32x1xf32>
    %47 = arith.mulf %46, %4 : vector<1x32x1xf32>
    %c1_17 = arith.constant 1 : index
    %c2_18 = arith.constant 2 : index
    %48 = memref.load %arg1[%c1_17, %c2_18] : memref<2x7xf32, #tpu.memory_space<smem>>
    %49 = vector.broadcast %48 : f32 to vector<1x32x1xf32>
    %50 = arith.mulf %49, %6 : vector<1x32x1xf32>
    %51 = arith.addf %47, %50 : vector<1x32x1xf32>
    %c1_i32 = arith.constant 1 : i32
    %52 = tpu.dynamic_rotate %51 by %c1_i32 dim 1 : vector<1x32x1xf32>, i32 -> vector<1x32x1xf32>
    %c-1_i32 = arith.constant -1 : i32
    %53 = vector.broadcast %c-1_i32 : i32 to vector<1x32x1xi32>
    %54 = arith.addi %7, %53 : vector<1x32x1xi32>
    %c0_i32_19 = arith.constant 0 : i32
    %55 = vector.broadcast %c0_i32_19 : i32 to vector<1x32x1xi32>
    %56 = arith.cmpi sge, %54, %55 : vector<1x32x1xi32>
    %c32_i32_20 = arith.constant 32 : i32
    %57 = vector.broadcast %c32_i32_20 : i32 to vector<1x32x1xi32>
    %58 = arith.cmpi slt, %54, %57 : vector<1x32x1xi32>
    %59 = arith.andi %56, %58 : vector<1x32x1xi1>
    %cst_21 = arith.constant 0.000000e+00 : f32
    %60 = vector.broadcast %cst_21 : f32 to vector<1x32x1xf32>
    %61 = arith.select %59, %52, %60 : vector<1x32x1xi1>, vector<1x32x1xf32>
    %62 = arith.addf %44, %61 : vector<1x32x1xf32>
    %c0_22 = arith.constant 0 : index
    %c3 = arith.constant 3 : index
    %63 = memref.load %arg1[%c0_22, %c3] : memref<2x7xf32, #tpu.memory_space<smem>>
    %64 = vector.broadcast %63 : f32 to vector<1x32x1xf32>
    %65 = arith.mulf %64, %4 : vector<1x32x1xf32>
    %c1_23 = arith.constant 1 : index
    %c3_24 = arith.constant 3 : index
    %66 = memref.load %arg1[%c1_23, %c3_24] : memref<2x7xf32, #tpu.memory_space<smem>>
    %67 = vector.broadcast %66 : f32 to vector<1x32x1xf32>
    %68 = arith.mulf %67, %6 : vector<1x32x1xf32>
    %69 = arith.addf %65, %68 : vector<1x32x1xf32>
    %70 = arith.addf %62, %69 : vector<1x32x1xf32>
    %c0_25 = arith.constant 0 : index
    %c4 = arith.constant 4 : index
    %71 = memref.load %arg1[%c0_25, %c4] : memref<2x7xf32, #tpu.memory_space<smem>>
    %72 = vector.broadcast %71 : f32 to vector<1x32x1xf32>
    %73 = arith.mulf %72, %4 : vector<1x32x1xf32>
    %c1_26 = arith.constant 1 : index
    %c4_27 = arith.constant 4 : index
    %74 = memref.load %arg1[%c1_26, %c4_27] : memref<2x7xf32, #tpu.memory_space<smem>>
    %75 = vector.broadcast %74 : f32 to vector<1x32x1xf32>
    %76 = arith.mulf %75, %6 : vector<1x32x1xf32>
    %77 = arith.addf %73, %76 : vector<1x32x1xf32>
    %c31_i32 = arith.constant 31 : i32
    %78 = tpu.dynamic_rotate %77 by %c31_i32 dim 1 : vector<1x32x1xf32>, i32 -> vector<1x32x1xf32>
    %c1_i32_28 = arith.constant 1 : i32
    %79 = vector.broadcast %c1_i32_28 : i32 to vector<1x32x1xi32>
    %80 = arith.addi %7, %79 : vector<1x32x1xi32>
    %c0_i32_29 = arith.constant 0 : i32
    %81 = vector.broadcast %c0_i32_29 : i32 to vector<1x32x1xi32>
    %82 = arith.cmpi sge, %80, %81 : vector<1x32x1xi32>
    %c32_i32_30 = arith.constant 32 : i32
    %83 = vector.broadcast %c32_i32_30 : i32 to vector<1x32x1xi32>
    %84 = arith.cmpi slt, %80, %83 : vector<1x32x1xi32>
    %85 = arith.andi %82, %84 : vector<1x32x1xi1>
    %cst_31 = arith.constant 0.000000e+00 : f32
    %86 = vector.broadcast %cst_31 : f32 to vector<1x32x1xf32>
    %87 = arith.select %85, %78, %86 : vector<1x32x1xi1>, vector<1x32x1xf32>
    %88 = arith.addf %70, %87 : vector<1x32x1xf32>
    %c0_32 = arith.constant 0 : index
    %c5 = arith.constant 5 : index
    %89 = memref.load %arg1[%c0_32, %c5] : memref<2x7xf32, #tpu.memory_space<smem>>
    %90 = vector.broadcast %89 : f32 to vector<1x32x1xf32>
    %91 = arith.mulf %90, %4 : vector<1x32x1xf32>
    %c1_33 = arith.constant 1 : index
    %c5_34 = arith.constant 5 : index
    %92 = memref.load %arg1[%c1_33, %c5_34] : memref<2x7xf32, #tpu.memory_space<smem>>
    %93 = vector.broadcast %92 : f32 to vector<1x32x1xf32>
    %94 = arith.mulf %93, %6 : vector<1x32x1xf32>
    %95 = arith.addf %91, %94 : vector<1x32x1xf32>
    %c30_i32 = arith.constant 30 : i32
    %96 = tpu.dynamic_rotate %95 by %c30_i32 dim 1 : vector<1x32x1xf32>, i32 -> vector<1x32x1xf32>
    %c2_i32_35 = arith.constant 2 : i32
    %97 = vector.broadcast %c2_i32_35 : i32 to vector<1x32x1xi32>
    %98 = arith.addi %7, %97 : vector<1x32x1xi32>
    %c0_i32_36 = arith.constant 0 : i32
    %99 = vector.broadcast %c0_i32_36 : i32 to vector<1x32x1xi32>
    %100 = arith.cmpi sge, %98, %99 : vector<1x32x1xi32>
    %c32_i32_37 = arith.constant 32 : i32
    %101 = vector.broadcast %c32_i32_37 : i32 to vector<1x32x1xi32>
    %102 = arith.cmpi slt, %98, %101 : vector<1x32x1xi32>
    %103 = arith.andi %100, %102 : vector<1x32x1xi1>
    %cst_38 = arith.constant 0.000000e+00 : f32
    %104 = vector.broadcast %cst_38 : f32 to vector<1x32x1xf32>
    %105 = arith.select %103, %96, %104 : vector<1x32x1xi1>, vector<1x32x1xf32>
    %106 = arith.addf %88, %105 : vector<1x32x1xf32>
    %c0_39 = arith.constant 0 : index
    %c6 = arith.constant 6 : index
    %107 = memref.load %arg1[%c0_39, %c6] : memref<2x7xf32, #tpu.memory_space<smem>>
    %108 = vector.broadcast %107 : f32 to vector<1x32x1xf32>
    %109 = arith.mulf %108, %4 : vector<1x32x1xf32>
    %c1_40 = arith.constant 1 : index
    %c6_41 = arith.constant 6 : index
    %110 = memref.load %arg1[%c1_40, %c6_41] : memref<2x7xf32, #tpu.memory_space<smem>>
    %111 = vector.broadcast %110 : f32 to vector<1x32x1xf32>
    %112 = arith.mulf %111, %6 : vector<1x32x1xf32>
    %113 = arith.addf %109, %112 : vector<1x32x1xf32>
    %c29_i32 = arith.constant 29 : i32
    %114 = tpu.dynamic_rotate %113 by %c29_i32 dim 1 : vector<1x32x1xf32>, i32 -> vector<1x32x1xf32>
    %c3_i32_42 = arith.constant 3 : i32
    %115 = vector.broadcast %c3_i32_42 : i32 to vector<1x32x1xi32>
    %116 = arith.addi %7, %115 : vector<1x32x1xi32>
    %c0_i32_43 = arith.constant 0 : i32
    %117 = vector.broadcast %c0_i32_43 : i32 to vector<1x32x1xi32>
    %118 = arith.cmpi sge, %116, %117 : vector<1x32x1xi32>
    %c32_i32_44 = arith.constant 32 : i32
    %119 = vector.broadcast %c32_i32_44 : i32 to vector<1x32x1xi32>
    %120 = arith.cmpi slt, %116, %119 : vector<1x32x1xi32>
    %121 = arith.andi %118, %120 : vector<1x32x1xi1>
    %cst_45 = arith.constant 0.000000e+00 : f32
    %122 = vector.broadcast %cst_45 : f32 to vector<1x32x1xf32>
    %123 = arith.select %121, %114, %122 : vector<1x32x1xi1>, vector<1x32x1xf32>
    %124 = arith.addf %106, %123 : vector<1x32x1xf32>
    %125 = arith.negf %124 : vector<1x32x1xf32>
    %126 = math.exp %125 : vector<1x32x1xf32>
    %cst_46 = arith.constant 1.000000e+00 : f32
    %127 = vector.broadcast %cst_46 : f32 to vector<1x32x1xf32>
    %128 = arith.addf %127, %126 : vector<1x32x1xf32>
    %129 = arith.divf %127, %128 : vector<1x32x1xf32>
    %c0_47 = arith.constant 0 : index
    %c0_48 = arith.constant 0 : index
    %c0_49 = arith.constant 0 : index
    %130 = vector.load %arg2[%c0_47, %c0_48, %c0_49] : memref<1x32x128xf32, #tpu.memory_space<vmem>>, vector<1x32x128xf32>
    %131 = vector.broadcast %129 : vector<1x32x1xf32> to vector<1x32x128xf32>
    %132 = arith.mulf %130, %131 : vector<1x32x128xf32>
    %c0_50 = arith.constant 0 : index
    %c0_51 = arith.constant 0 : index
    %c0_52 = arith.constant 0 : index
    %133 = vector.load %arg3[%c0_50, %c0_51, %c0_52] : memref<1x32x128xf32, #tpu.memory_space<vmem>>, vector<1x32x128xf32>
    tpu.vector_store %arg3[%c0_50, %c0_51, %c0_52], %132 {strides = array<i32>} : memref<1x32x128xf32, #tpu.memory_space<vmem>>, vector<1x32x128xf32>,
    return
  }
  func.func @transform_0(%arg0: i32) -> (i32, i32) {
    %c0_i32 = arith.constant 0 : i32
    %c0_i32_0 = arith.constant 0 : i32
    %c0_i32_1 = arith.constant 0 : i32
    return %c0_i32, %c0_i32_0 : i32, i32
  }
  func.func @transform_1(%arg0: i32) -> (i32, i32, i32) {
    %c0_i32 = arith.constant 0 : i32
    %c0_i32_0 = arith.constant 0 : i32
    %c0_i32_1 = arith.constant 0 : i32
    return %arg0, %c0_i32, %c0_i32_0 : i32, i32, i32
  }
  func.func @transform_2(%arg0: i32) -> (i32, i32, i32) {
    %c0_i32 = arith.constant 0 : i32
    %c0_i32_0 = arith.constant 0 : i32
    %c0_i32_1 = arith.constant 0 : i32
    return %arg0, %c0_i32, %c0_i32_0 : i32, i32, i32
  }
}

</mosaic_0001>

<llo_original>
// kernel: tpu_custom_call.1
$region0: #{tpu_custom_call.1}
  #allocation0 [shape = 'u32[]', space=smem, size = 0x4, offset = 0x4, fixed_abs, tag = 'smem constant byte address 0x4 - core index']
  #allocation1 [shape = 'u32[144,128]{1,0:T(1,128)}', space=vmem, size = 0x12000, scoped, tag = 'internal scratch']
  %s0 = inlined_call_operand.hbm [shape: f32[2,7], index: 0, kind: input, shape index: {}]
  %s1 = inlined_call_operand.hbm [shape: f32[4,32,128], index: 1, kind: input, shape index: {}]
  %s2 = inlined_call_operand.hbm [shape: f32[4,32,128], index: 2, kind: output, shape index: {}]
  %s3 = sld [smem:[#allocation0]]
  $region49: #{tpu_custom_call.1} parent=0
    _
  %s5 = ssub.s32 1, %s3
  %s6 = scalar_select 0, %s5, %s3
  $region1: #{tpu_custom_call.1} parent=0
    #allocation2 [shape = 'u8[1024]{0}', space=smem, size = 0x400, scoped, tag = 'input window, operand 0, single buffered']
    #allocation3 [shape = 's32[2]{0}', space=sflag, size = 0x8, scoped, tag = 'scoped memory for tpu_custom_call.1']
    #allocation4 [shape = 's32[2]{0}', space=sflag, size = 0x8, scoped, tag = 'scoped memory for tpu_custom_call.1']
    #allocation5 [shape = 's32[2]{0}', space=sflag, size = 0x8, scoped, tag = 'scoped memory for tpu_custom_call.1']
    #allocation6 [shape = 'u8[32768]{0}', space=vmem, size = 0x8000, scoped, tag = 'input window, operand 1']
    #allocation7 [shape = 'u8[32768]{0}', space=vmem, size = 0x8000, scoped, tag = 'output window, operand 0']
    %7 = vsyncpa [#allocation5], 0
    %8 = vsyncpa [#allocation3], 0
    %s9 = scalar_lea.sflag [#allocation3], 1
    %10 = vsyncpa %s9, 0
    %11 = vsyncpa [#allocation4], 0
    %s12 = scalar_lea.sflag [#allocation4], 1
    %13 = vsyncpa %s12, 0
    loop: start=0, step=1, limit=6
    $region2: #{tpu_custom_call.1} parent=1 // loop_pre_header
      _
    $region3: #{tpu_custom_call.1} parent=1 // loop_header
      %s15 = sphi 0, %s19
      %p16 = scmp.ge.s32.totalorder %s15, 6
      %s23 = sphi 0, %s23
      %s25 = sphi 0, %s23
      %s26 = sphi 0, %s25
      %s40 = sphi 0, %s26
      %s46 = sphi 0, %s48
      %s49 = sphi 0, %s46
      %s50 = sphi 0, %s49
      %s66 = sphi 0, %s50
      %s72 = sphi 0, %s74
      %s75 = sphi 0, %s72
      %s76 = sphi 0, %s75
      %s92 = sphi 0, %s76
    $region4: #{tpu_custom_call.1} parent=1 // loop_header_branch
      %18 = sbr.rel (%p16) target = $region8
    $region5: #{tpu_custom_call.1} parent=1 // loop_body
      %s20 = ssub.s32 %s15, 1
      %s21 = ssub.s32 %s15, 2
      %s22 = sadd.s32 %s15, 1
      %s24 = sadd.s32 %s23, 1
      %p27 = scmp.eq.s32.totalorder %s15, 3
      %p28 = scmp.ne.s32.totalorder %s23, %s25
      %p29 = scmp.eq.s32.totalorder %s15, 0
      %p30 = por %p28, %p29
      %p31 = scmp.ne.s32.totalorder %s23, %s25
      %p32 = scmp.eq.s32.totalorder %s20, 3
      %p33 = por %p31, %p32
      %p34 = scmp.ne.s32.totalorder %s25, %s26
      %p35 = scmp.eq.s32.totalorder %s20, 0
      %p36 = por %p34, %p35
      %p37 = scmp.ne.s32.totalorder %s25, %s26
      %p38 = scmp.eq.s32.totalorder %s21, 3
      %p39 = por %p37, %p38
      %p41 = scmp.ne.s32.totalorder %s26, %s40
      %p42 = scmp.eq.s32.totalorder %s21, 0
      %p43 = por %p41, %p42
      %s44 = ssub.s32 %s15, %s22
      %p45 = scmp.eq.s32.totalorder %s44, 0
      %s47 = sadd.s32 %s46, 1
      %s48 = scalar_select %p45, %s46, %s47
      %p51 = pneg %p45
      %p52 = scmp.eq.s32.totalorder %s15, 3
      %p53 = por %p51, %p52
      %p54 = scmp.ne.s32.totalorder %s46, %s49
      %p55 = scmp.eq.s32.totalorder %s15, 0
      %p56 = por %p54, %p55
      %p57 = scmp.ne.s32.totalorder %s46, %s49
      %p58 = scmp.eq.s32.totalorder %s20, 3
      %p59 = por %p57, %p58
      %p60 = scmp.ne.s32.totalorder %s49, %s50
      %p61 = scmp.eq.s32.totalorder %s20, 0
      %p62 = por %p60, %p61
      %p63 = scmp.ne.s32.totalorder %s49, %s50
      %p64 = scmp.eq.s32.totalorder %s21, 3
      %p65 = por %p63, %p64
      %p67 = scmp.ne.s32.totalorder %s50, %s66
      %p68 = scmp.eq.s32.totalorder %s21, 0
      %p69 = por %p67, %p68
      %s70 = ssub.s32 %s15, %s22
      %p71 = scmp.eq.s32.totalorder %s70, 0
      %s73 = sadd.s32 %s72, 1
      %s74 = scalar_select %p71, %s72, %s73
      %p77 = pneg %p71
      %p78 = scmp.eq.s32.totalorder %s15, 3
      %p79 = por %p77, %p78
      %p80 = scmp.ne.s32.totalorder %s72, %s75
      %p81 = scmp.eq.s32.totalorder %s15, 0
      %p82 = por %p80, %p81
      %p83 = scmp.ne.s32.totalorder %s72, %s75
      %p84 = scmp.eq.s32.totalorder %s20, 3
      %p85 = por %p83, %p84
      %p86 = scmp.ne.s32.totalorder %s75, %s76
      %p87 = scmp.eq.s32.totalorder %s20, 0
      %p88 = por %p86, %p87
      %p89 = scmp.ne.s32.totalorder %s75, %s76
      %p90 = scmp.eq.s32.totalorder %s21, 3
      %p91 = por %p89, %p90
      %p93 = scmp.ne.s32.totalorder %s76, %s92
      %p94 = scmp.eq.s32.totalorder %s21, 0
      %p95 = por %p93, %p94
      %p96 = scmp.le.s32.totalorder 1, %s15
      %p97 = scmp.lt.s32.totalorder %s15, 5
      %p98 = pnand %p96, %p97
      %p99 = pneg %p98
      // Predicated region
      $region9: #{tpu_custom_call.1} parent=5 // pred_check
        _
      $region10: #{tpu_custom_call.1} parent=5 // pred_check_branch
        %101 = sbr.rel (%p98) target = $region12
      $region11: #{tpu_custom_call.1} parent=5 // pred_region
        %s102 = ssub.s32 %s15, 1
        // Predicated region
        $region13: #{tpu_custom_call.1} parent=11 // pred_check
          %p103 = pneg %p36
        $region14: #{tpu_custom_call.1} parent=11 // pred_check_branch
          %105 = sbr.rel (%p103) target = $region16
        $region15: #{tpu_custom_call.1} parent=11 // pred_region
          %s107 = ssub.s32 32, 32
          %108 = vsyncadd [#allocation5], %s107
          %111 = dma.hbm_to_smem %s0, 32, [#allocation2], [#allocation5]
        $region16: #{tpu_custom_call.1} parent=11 // pred_fallthru
          _
      $region12: #{tpu_custom_call.1} parent=5 // pred_fallthru
        _
      %p112 = scmp.lt.s32.totalorder %s15, 4
      // Predicated region
      $region17: #{tpu_custom_call.1} parent=5 // pred_check
        %p113 = pneg %p112
      $region18: #{tpu_custom_call.1} parent=5 // pred_check_branch
        %115 = sbr.rel (%p113) target = $region20
      $region19: #{tpu_custom_call.1} parent=5 // pred_region
        // Predicated region
        $region21: #{tpu_custom_call.1} parent=19 // pred_check
          %p116 = pneg %p56
        $region22: #{tpu_custom_call.1} parent=19 // pred_check_branch
          %118 = sbr.rel (%p116) target = $region24
        $region23: #{tpu_custom_call.1} parent=19 // pred_region
          %s119 = sand.u32 %s46, 1
          %s120 = scalar_lea.sflag [#allocation3], %s119
          %s121 = sand.u32 %s46, 1
          %s122 = smul.addr %s121, 32
          %s123 = scalar_lea.vmem [#allocation6], %s122
          %s125 = ssub.s32 512, 512
          %126 = vsyncadd %s120, %s125
          %s127 = smul.addr %s15, 4
          %s128 = smul.addr %s127, 128
          %s129 = scalar_lea.hbm %s1, %s128
          %s130 = sshll.u32 %s123, 4
          %s131 = int_to_ptr.vmem [resolvable:$true] %s130
          %136 = dma.hbm_to_vmem [thread:$0]  %s129, 512, %s131, %s120, 128, 128, 8
        $region24: #{tpu_custom_call.1} parent=19 // pred_fallthru
          _
      $region20: #{tpu_custom_call.1} parent=5 // pred_fallthru
        _
      %p137 = scmp.le.s32.totalorder 1, %s15
      %p138 = scmp.lt.s32.totalorder %s15, 5
      %p139 = pnand %p137, %p138
      %p140 = pneg %p139
      // Predicated region
      $region25: #{tpu_custom_call.1} parent=5 // pred_check
        _
      $region26: #{tpu_custom_call.1} parent=5 // pred_check_branch
        %142 = sbr.rel (%p139) target = $region28
      $region27: #{tpu_custom_call.1} parent=5 // pred_region
        %s143 = ssub.s32 %s15, 1
        // Predicated region
        $region29: #{tpu_custom_call.1} parent=27 // pred_check
          %p144 = pneg %p36
        $region30: #{tpu_custom_call.1} parent=27 // pred_check_branch
          %146 = sbr.rel (%p144) target = $region32
        $region31: #{tpu_custom_call.1} parent=27 // pred_region
          %147 = dma.done [#allocation5], 32
        $region32: #{tpu_custom_call.1} parent=27 // pred_fallthru
          _
        %s148 = sand.u32 %s49, 1
        %s149 = scalar_lea.sflag [#allocation3], %s148
        %s150 = sand.u32 %s49, 1
        %s151 = smul.addr %s150, 32
        %s152 = scalar_lea.vmem [#allocation6], %s151
        // Predicated region
        $region33: #{tpu_custom_call.1} parent=27 // pred_check
          %p153 = pneg %p62
        $region34: #{tpu_custom_call.1} parent=27 // pred_check_branch
          %155 = sbr.rel (%p153) target = $region36
        $region35: #{tpu_custom_call.1} parent=27 // pred_region
          %156 = dma.done %s149, 512
        $region36: #{tpu_custom_call.1} parent=27 // pred_fallthru
          _
        %157 = sfence
        %p158 = pneg %p36
        %p159 = pneg %p33
        %s160 = sand.u32 %s49, 1
        %s161 = scalar_lea.sflag [#allocation3], %s160
        %s162 = sand.u32 %s49, 1
        %s163 = smul.addr %s162, 32
        %s164 = scalar_lea.vmem [#allocation6], %s163
        %p165 = pneg %p62
        %p166 = pneg %p59
        %p167 = pneg %p88
        %p168 = pneg %p85
        %s169 = sand.u32 %s75, 1
        %s170 = scalar_lea.sflag [#allocation4], %s169
        %s171 = sand.u32 %s75, 1
        %s172 = smul.addr %s171, 32
        %s173 = scalar_lea.vmem [#allocation7], %s172
        %v174 = vld [vmem:[%s152] sm:$0xff]
        %v175 = vld [vmem:[%s152 + $0x8] sm:$0xff]
        %v176 = vld [vmem:[%s152 + $0x10] sm:$0xff]
        %v177 = vld [vmem:[%s152 + $0x18] sm:$0xff]
        %178 = vadd.xlane.f32.xlu0 %v174
        %v179 = vpop.xlane.xlu0 %178
        %180 = vadd.xlane.f32.xlu0 %v175
        %v181 = vpop.xlane.xlu0 %180
        %182 = vadd.xlane.f32.xlu0 %v176
        %v183 = vpop.xlane.xlu0 %182
        %184 = vadd.xlane.f32.xlu0 %v177
        %v185 = vpop.xlane.xlu0 %184
        %v186 = vrcp.pop 128.0
        %v187 = vmul.f32 %v179, %v186
        %v188 = vmul.f32 %v181, %v186
        %v189 = vmul.f32 %v183, %v186
        %v190 = vmul.f32 %v185, %v186
        %191 = vmax.xlane.f32.xlu0 %v174
        %v192 = vpop.xlane.xlu0 %191
        %193 = vmax.xlane.f32.xlu0 %v175
        %v194 = vpop.xlane.xlu0 %193
        %195 = vmax.xlane.f32.xlu0 %v176
        %v196 = vpop.xlane.xlu0 %195
        %197 = vmax.xlane.f32.xlu0 %v177
        %v198 = vpop.xlane.xlu0 %197
        %v199 = vlaneseq
        %v200 = vshrl.u32 %v199, 7
        %v201 = vadd.s32 %v200, 8
        %v202 = vadd.s32 %v200, 16
        %v203 = vadd.s32 %v200, 24
        %s204 = sld [smem:[#allocation2]]
        %v205 = vstv %s204
        %v206 = vmul.f32 %v205, %v187
        %v207 = vmul.f32 %v205, %v188
        %v208 = vmul.f32 %v205, %v189
        %v209 = vmul.f32 %v205, %v190
        %s210 = sld [smem:[#allocation2 + $0x80]]
        %v211 = vstv %s210
        %v212 = vmul.f32 %v211, %v192
        %v213 = vmul.f32 %v211, %v194
        %v214 = vmul.f32 %v211, %v196
        %v215 = vmul.f32 %v211, %v198
        %v216 = vadd.f32 %v206, %v212
        %v217 = vadd.f32 %v207, %v213
        %v218 = vadd.f32 %v208, %v214
        %v219 = vadd.f32 %v209, %v215
        %v220 = vrot.slane %v216, 5
        %v221 = vrot.slane %v217, 5
        %v222 = vrot.slane %v218, 5
        %v223 = vrot.slane %v219, 5
        %vm224 = vcmp.lt.s32.totalorder %v200, 3
        %v225 = vsel %vm224, %v222, %v223
        %v226 = vsel %vm224, %v221, %v222
        %v227 = vsel %vm224, %v220, %v221
        %v228 = vsel %vm224, %v223, %v220
        %v229 = vadd.s32 %v200, 4294967293
        %v230 = vadd.s32 %v201, 4294967293
        %v231 = vadd.s32 %v202, 4294967293
        %v232 = vadd.s32 %v203, 4294967293
        %vm233 = vcmp.ge.s32.totalorder %v229, 0
        %vm234 = vcmp.ge.s32.totalorder %v230, 0
        %vm235 = vcmp.ge.s32.totalorder %v231, 0
        %vm236 = vcmp.ge.s32.totalorder %v232, 0
        %vm237 = vcmp.lt.s32.totalorder %v229, 32
        %vm238 = vcmp.lt.s32.totalorder %v230, 32
        %vm239 = vcmp.lt.s32.totalorder %v231, 32
        %vm240 = vcmp.lt.s32.totalorder %v232, 32
        %vm241 = vmand %vm233, %vm237
        %vm242 = vmand %vm234, %vm238
        %vm243 = vmand %vm235, %vm239
        %vm244 = vmand %vm236, %vm240
        %v245 = vsel %vm241, %v228, 0.0
        %v246 = vsel %vm242, %v227, 0.0
        %v247 = vsel %vm243, %v226, 0.0
        %v248 = vsel %vm244, %v225, 0.0
        %v249 = vadd.f32 %v245, 0.0
        %v250 = vadd.f32 %v246, 0.0
        %v251 = vadd.f32 %v247, 0.0
        %v252 = vadd.f32 %v248, 0.0
        %s253 = sld [smem:[#allocation2 + $0x1]]
        %v254 = vstv %s253
        %v255 = vmul.f32 %v254, %v187
        %v256 = vmul.f32 %v254, %v188
        %v257 = vmul.f32 %v254, %v189
        %v258 = vmul.f32 %v254, %v190
        %s259 = sld [smem:[#allocation2 + $0x81]]
        %v260 = vstv %s259
        %v261 = vmul.f32 %v260, %v192
        %v262 = vmul.f32 %v260, %v194
        %v263 = vmul.f32 %v260, %v196
        %v264 = vmul.f32 %v260, %v198
        %v265 = vadd.f32 %v255, %v261
        %v266 = vadd.f32 %v256, %v262
        %v267 = vadd.f32 %v257, %v263
        %v268 = vadd.f32 %v258, %v264
        %v269 = vrot.slane %v265, 6
        %v270 = vrot.slane %v266, 6
        %v271 = vrot.slane %v267, 6
        %v272 = vrot.slane %v268, 6
        %vm273 = vcmp.lt.s32.totalorder %v200, 2
        %v274 = vsel %vm273, %v271, %v272
        %v275 = vsel %vm273, %v270, %v271
        %v276 = vsel %vm273, %v269, %v270
        %v277 = vsel %vm273, %v272, %v269
        %v278 = vadd.s32 %v200, 4294967294
        %v279 = vadd.s32 %v201, 4294967294
        %v280 = vadd.s32 %v202, 4294967294
        %v281 = vadd.s32 %v203, 4294967294
        %vm282 = vcmp.ge.s32.totalorder %v278, 0
        %vm283 = vcmp.ge.s32.totalorder %v279, 0
        %vm284 = vcmp.ge.s32.totalorder %v280, 0
        %vm285 = vcmp.ge.s32.totalorder %v281, 0
        %vm286 = vcmp.lt.s32.totalorder %v278, 32
        %vm287 = vcmp.lt.s32.totalorder %v279, 32
        %vm288 = vcmp.lt.s32.totalorder %v280, 32
        %vm289 = vcmp.lt.s32.totalorder %v281, 32
        %vm290 = vmand %vm282, %vm286
        %vm291 = vmand %vm283, %vm287
        %vm292 = vmand %vm284, %vm288
        %vm293 = vmand %vm285, %vm289
        %v294 = vsel %vm290, %v277, 0.0
        %v295 = vsel %vm291, %v276, 0.0
        %v296 = vsel %vm292, %v275, 0.0
        %v297 = vsel %vm293, %v274, 0.0
        %v298 = vadd.f32 %v249, %v294
        %v299 = vadd.f32 %v250, %v295
        %v300 = vadd.f32 %v251, %v296
        %v301 = vadd.f32 %v252, %v297
        %s302 = sld [smem:[#allocation2 + $0x2]]
        %v303 = vstv %s302
        %v304 = vmul.f32 %v303, %v187
        %v305 = vmul.f32 %v303, %v188
        %v306 = vmul.f32 %v303, %v189
        %v307 = vmul.f32 %v303, %v190
        %s308 = sld [smem:[#allocation2 + $0x82]]
        %v309 = vstv %s308
        %v310 = vmul.f32 %v309, %v192
        %v311 = vmul.f32 %v309, %v194
        %v312 = vmul.f32 %v309, %v196
        %v313 = vmul.f32 %v309, %v198
        %v314 = vadd.f32 %v304, %v310
        %v315 = vadd.f32 %v305, %v311
        %v316 = vadd.f32 %v306, %v312
        %v317 = vadd.f32 %v307, %v313
        %v318 = vrot.slane %v314, 7
        %v319 = vrot.slane %v315, 7
        %v320 = vrot.slane %v316, 7
        %v321 = vrot.slane %v317, 7
        %vm322 = vcmp.lt.s32.totalorder %v200, 1
        %v323 = vsel %vm322, %v320, %v321
        %v324 = vsel %vm322, %v319, %v320
        %v325 = vsel %vm322, %v318, %v319
        %v326 = vsel %vm322, %v321, %v318
        %v327 = vadd.s32 %v200, 4294967295
        %v328 = vadd.s32 %v201, 4294967295
        %v329 = vadd.s32 %v202, 4294967295
        %v330 = vadd.s32 %v203, 4294967295
        %vm331 = vcmp.ge.s32.totalorder %v327, 0
        %vm332 = vcmp.ge.s32.totalorder %v328, 0
        %vm333 = vcmp.ge.s32.totalorder %v329, 0
        %vm334 = vcmp.ge.s32.totalorder %v330, 0
        %vm335 = vcmp.lt.s32.totalorder %v327, 32
        %vm336 = vcmp.lt.s32.totalorder %v328, 32
        %vm337 = vcmp.lt.s32.totalorder %v329, 32
        %vm338 = vcmp.lt.s32.totalorder %v330, 32
        %vm339 = vmand %vm331, %vm335
        %vm340 = vmand %vm332, %vm336
        %vm341 = vmand %vm333, %vm337
        %vm342 = vmand %vm334, %vm338
        %v343 = vsel %vm339, %v326, 0.0
        %v344 = vsel %vm340, %v325, 0.0
        %v345 = vsel %vm341, %v324, 0.0
        %v346 = vsel %vm342, %v323, 0.0
        %v347 = vadd.f32 %v298, %v343
        %v348 = vadd.f32 %v299, %v344
        %v349 = vadd.f32 %v300, %v345
        %v350 = vadd.f32 %v301, %v346
        %s351 = sld [smem:[#allocation2 + $0x3]]
        %v352 = vstv %s351
        %v353 = vmul.f32 %v352, %v187
        %v354 = vmul.f32 %v352, %v188
        %v355 = vmul.f32 %v352, %v189
        %v356 = vmul.f32 %v352, %v190
        %s357 = sld [smem:[#allocation2 + $0x83]]
        %v358 = vstv %s357
        %v359 = vmul.f32 %v358, %v192
        %v360 = vmul.f32 %v358, %v194
        %v361 = vmul.f32 %v358, %v196
        %v362 = vmul.f32 %v358, %v198
        %v363 = vadd.f32 %v353, %v359
        %v364 = vadd.f32 %v354, %v360
        %v365 = vadd.f32 %v355, %v361
        %v366 = vadd.f32 %v356, %v362
        %v367 = vadd.f32 %v347, %v363
        %v368 = vadd.f32 %v348, %v364
        %v369 = vadd.f32 %v349, %v365
        %v370 = vadd.f32 %v350, %v366
        %s371 = sld [smem:[#allocation2 + $0x4]]
        %v372 = vstv %s371
        %v373 = vmul.f32 %v372, %v187
        %v374 = vmul.f32 %v372, %v188
        %v375 = vmul.f32 %v372, %v189
        %v376 = vmul.f32 %v372, %v190
        %s377 = sld [smem:[#allocation2 + $0x84]]
        %v378 = vstv %s377
        %v379 = vmul.f32 %v378, %v192
        %v380 = vmul.f32 %v378, %v194
        %v381 = vmul.f32 %v378, %v196
        %v382 = vmul.f32 %v378, %v198
        %v383 = vadd.f32 %v373, %v379
        %v384 = vadd.f32 %v374, %v380
        %v385 = vadd.f32 %v375, %v381
        %v386 = vadd.f32 %v376, %v382
        %v387 = vrot.slane %v383, 1
        %v388 = vrot.slane %v384, 1
        %v389 = vrot.slane %v385, 1
        %v390 = vrot.slane %v386, 1
        %vm391 = vcmp.lt.s32.totalorder %v200, 7
        %v392 = vsel %vm391, %v389, %v390
        %v393 = vsel %vm391, %v388, %v389
        %v394 = vsel %vm391, %v387, %v388
        %v395 = vsel %vm391, %v390, %v387
        %v396 = vadd.s32 %v200, 1
        %v397 = vadd.s32 %v201, 1
        %v398 = vadd.s32 %v202, 1
        %v399 = vadd.s32 %v203, 1
        %vm400 = vcmp.ge.s32.totalorder %v396, 0
        %vm401 = vcmp.ge.s32.totalorder %v397, 0
        %vm402 = vcmp.ge.s32.totalorder %v398, 0
        %vm403 = vcmp.ge.s32.totalorder %v399, 0
        %vm404 = vcmp.lt.s32.totalorder %v396, 32
        %vm405 = vcmp.lt.s32.totalorder %v397, 32
        %vm406 = vcmp.lt.s32.totalorder %v398, 32
        %vm407 = vcmp.lt.s32.totalorder %v399, 32
        %vm408 = vmand %vm400, %vm404
        %vm409 = vmand %vm401, %vm405
        %vm410 = vmand %vm402, %vm406
        %vm411 = vmand %vm403, %vm407
        %v412 = vsel %vm408, %v394, 0.0
        %v413 = vsel %vm409, %v393, 0.0
        %v414 = vsel %vm410, %v392, 0.0
        %v415 = vsel %vm411, %v395, 0.0
        %v416 = vadd.f32 %v367, %v412
        %v417 = vadd.f32 %v368, %v413
        %v418 = vadd.f32 %v369, %v414
        %v419 = vadd.f32 %v370, %v415
        %s420 = sld [smem:[#allocation2 + $0x5]]
        %v421 = vstv %s420
        %v422 = vmul.f32 %v421, %v187
        %v423 = vmul.f32 %v421, %v188
        %v424 = vmul.f32 %v421, %v189
        %v425 = vmul.f32 %v421, %v190
        %s426 = sld [smem:[#allocation2 + $0x85]]
        %v427 = vstv %s426
        %v428 = vmul.f32 %v427, %v192
        %v429 = vmul.f32 %v427, %v194
        %v430 = vmul.f32 %v427, %v196
        %v431 = vmul.f32 %v427, %v198
        %v432 = vadd.f32 %v422, %v428
        %v433 = vadd.f32 %v423, %v429
        %v434 = vadd.f32 %v424, %v430
        %v435 = vadd.f32 %v425, %v431
        %v436 = vrot.slane %v432, 2
        %v437 = vrot.slane %v433, 2
        %v438 = vrot.slane %v434, 2
        %v439 = vrot.slane %v435, 2
        %vm440 = vcmp.lt.s32.totalorder %v200, 6
        %v441 = vsel %vm440, %v438, %v439
        %v442 = vsel %vm440, %v437, %v438
        %v443 = vsel %vm440, %v436, %v437
        %v444 = vsel %vm440, %v439, %v436
        %v445 = vadd.s32 %v200, 2
        %v446 = vadd.s32 %v201, 2
        %v447 = vadd.s32 %v202, 2
        %v448 = vadd.s32 %v203, 2
        %vm449 = vcmp.ge.s32.totalorder %v445, 0
        %vm450 = vcmp.ge.s32.totalorder %v446, 0
        %vm451 = vcmp.ge.s32.totalorder %v447, 0
        %vm452 = vcmp.ge.s32.totalorder %v448, 0
        %vm453 = vcmp.lt.s32.totalorder %v445, 32
        %vm454 = vcmp.lt.s32.totalorder %v446, 32
        %vm455 = vcmp.lt.s32.totalorder %v447, 32
        %vm456 = vcmp.lt.s32.totalorder %v448, 32
        %vm457 = vmand %vm449, %vm453
        %vm458 = vmand %vm450, %vm454
        %vm459 = vmand %vm451, %vm455
        %vm460 = vmand %vm452, %vm456
        %v461 = vsel %vm457, %v443, 0.0
        %v462 = vsel %vm458, %v442, 0.0
        %v463 = vsel %vm459, %v441, 0.0
        %v464 = vsel %vm460, %v444, 0.0
        %v465 = vadd.f32 %v416, %v461
        %v466 = vadd.f32 %v417, %v462
        %v467 = vadd.f32 %v418, %v463
        %v468 = vadd.f32 %v419, %v464
        %s469 = sld [smem:[#allocation2 + $0x6]]
        %v470 = vstv %s469
        %v471 = vmul.f32 %v470, %v187
        %v472 = vmul.f32 %v470, %v188
        %v473 = vmul.f32 %v470, %v189
        %v474 = vmul.f32 %v470, %v190
        %s475 = sld [smem:[#allocation2 + $0x86]]
        %v476 = vstv %s475
        %v477 = vmul.f32 %v476, %v192
        %v478 = vmul.f32 %v476, %v194
        %v479 = vmul.f32 %v476, %v196
        %v480 = vmul.f32 %v476, %v198
        %v481 = vadd.f32 %v471, %v477
        %v482 = vadd.f32 %v472, %v478
        %v483 = vadd.f32 %v473, %v479
        %v484 = vadd.f32 %v474, %v480
        %v485 = vrot.slane %v481, 3
        %v486 = vrot.slane %v482, 3
        %v487 = vrot.slane %v483, 3
        %v488 = vrot.slane %v484, 3
        %vm489 = vcmp.lt.s32.totalorder %v200, 5
        %v490 = vsel %vm489, %v487, %v488
        %v491 = vsel %vm489, %v486, %v487
        %v492 = vsel %vm489, %v485, %v486
        %v493 = vsel %vm489, %v488, %v485
        %v494 = vadd.s32 %v200, 3
        %v495 = vadd.s32 %v201, 3
        %v496 = vadd.s32 %v202, 3
        %v497 = vadd.s32 %v203, 3
        %vm498 = vcmp.ge.s32.totalorder %v494, 0
        %vm499 = vcmp.ge.s32.totalorder %v495, 0
        %vm500 = vcmp.ge.s32.totalorder %v496, 0
        %vm501 = vcmp.ge.s32.totalorder %v497, 0
        %vm502 = vcmp.lt.s32.totalorder %v494, 32
        %vm503 = vcmp.lt.s32.totalorder %v495, 32
        %vm504 = vcmp.lt.s32.totalorder %v496, 32
        %vm505 = vcmp.lt.s32.totalorder %v497, 32
        %vm506 = vmand %vm498, %vm502
        %vm507 = vmand %vm499, %vm503
        %vm508 = vmand %vm500, %vm504
        %vm509 = vmand %vm501, %vm505
        %v510 = vsel %vm506, %v492, 0.0
        %v511 = vsel %vm507, %v491, 0.0
        %v512 = vsel %vm508, %v490, 0.0
        %v513 = vsel %vm509, %v493, 0.0
        %v514 = vadd.f32 %v465, %v510
        %v515 = vadd.f32 %v466, %v511
        %v516 = vadd.f32 %v467, %v512
        %v517 = vadd.f32 %v468, %v513
        %v518 = vxor.u32 %v514, 2147483648
        %v519 = vxor.u32 %v515, 2147483648
        %v520 = vxor.u32 %v516, 2147483648
        %v521 = vxor.u32 %v517, 2147483648
        %v522 = vmul.f32 %v518, 1.442695
        %v523 = vpow.pop %v522
        %v524 = vmul.f32 %v519, 1.442695
        %v525 = vpow.pop %v524
        %v526 = vmul.f32 %v520, 1.442695
        %v527 = vpow.pop %v526
        %v528 = vmul.f32 %v521, 1.442695
        %v529 = vpow.pop %v528
        %v530 = vadd.f32 %v523, 1.0
        %v531 = vadd.f32 %v525, 1.0
        %v532 = vadd.f32 %v527, 1.0
        %v533 = vadd.f32 %v529, 1.0
        %v534 = vrcp.pop %v530
        %v535 = vmul.f32 1.0, %v534
        %v536 = vrcp.pop %v531
        %v537 = vmul.f32 1.0, %v536
        %v538 = vrcp.pop %v532
        %v539 = vmul.f32 1.0, %v538
        %v540 = vrcp.pop %v533
        %v541 = vmul.f32 1.0, %v540
        %543 = vset.pattern.permute.xlu0 0
        %544 = vperm.xlu0 %543, %v535
        %v545 = vpop.permute.xlu0 %544
        %548 = vset.pattern.permute.xlu0 0
        %549 = vperm.xlu0 %548, %v537
        %v550 = vpop.permute.xlu0 %549
        %553 = vset.pattern.permute.xlu0 0
        %554 = vperm.xlu0 %553, %v539
        %v555 = vpop.permute.xlu0 %554
        %558 = vset.pattern.permute.xlu0 0
        %559 = vperm.xlu0 %558, %v541
        %v560 = vpop.permute.xlu0 %559
        %v562 = vmul.f32 %v174, %v545
        %v563 = vmul.f32 %v175, %v550
        %v564 = vmul.f32 %v176, %v555
        %v565 = vmul.f32 %v177, %v560
        %566 = vst [vmem:[%s173] sm:$0xff] %v562
        %567 = vst [vmem:[%s173 + $0x8] sm:$0xff] %v563
        %568 = vst [vmem:[%s173 + $0x10] sm:$0xff] %v564
        %569 = vst [vmem:[%s173 + $0x18] sm:$0xff] %v565
        %s570 = sand.u32 %s75, 1
        %s571 = scalar_lea.sflag [#allocation4], %s570
        %s572 = sand.u32 %s75, 1
        %s573 = smul.addr %s572, 32
        %s574 = scalar_lea.vmem [#allocation7], %s573
        // Predicated region
        $region37: #{tpu_custom_call.1} parent=27 // pred_check
          %p575 = pneg %p85
        $region38: #{tpu_custom_call.1} parent=27 // pred_check_branch
          %577 = sbr.rel (%p575) target = $region40
        $region39: #{tpu_custom_call.1} parent=27 // pred_region
          %s579 = ssub.s32 512, 512
          %580 = vsyncadd %s571, %s579
          %s581 = smul.addr %s20, 4
          %s582 = smul.addr %s581, 128
          %s583 = scalar_lea.hbm %s2, %s582
          %s584 = sshll.u32 %s574, 4
          %s585 = int_to_ptr.vmem [resolvable:$true] %s584
          %590 = dma.vmem_to_hbm [thread:$0]  %s585, 512, %s583, %s571, 128, 128, 8
        $region40: #{tpu_custom_call.1} parent=27 // pred_fallthru
          _
      $region28: #{tpu_custom_call.1} parent=5 // pred_fallthru
        _
      %p591 = scmp.le.s32.totalorder 2, %s15
      // Predicated region
      $region41: #{tpu_custom_call.1} parent=5 // pred_check
        %p592 = pneg %p591
      $region42: #{tpu_custom_call.1} parent=5 // pred_check_branch
        %594 = sbr.rel (%p592) target = $region44
      $region43: #{tpu_custom_call.1} parent=5 // pred_region
        %s595 = ssub.s32 %s15, 2
        // Predicated region
        $region45: #{tpu_custom_call.1} parent=43 // pred_check
          %p596 = pneg %p91
        $region46: #{tpu_custom_call.1} parent=43 // pred_check_branch
          %598 = sbr.rel (%p596) target = $region48
        $region47: #{tpu_custom_call.1} parent=43 // pred_region
          %s599 = sand.u32 %s76, 1
          %s600 = scalar_lea.sflag [#allocation4], %s599
          %s601 = sand.u32 %s76, 1
          %s602 = smul.addr %s601, 32
          %s603 = scalar_lea.vmem [#allocation7], %s602
          %604 = dma.done %s600, 512
        $region48: #{tpu_custom_call.1} parent=43 // pred_fallthru
          _
      $region44: #{tpu_custom_call.1} parent=5 // pred_fallthru
        _
    $region6: #{tpu_custom_call.1} parent=1 // loop_footer
      %s19 = sadd.s32 1, %s15
    $region7: #{tpu_custom_call.1} parent=1 // loop_footer_branch
      %14 = sbr.rel target = $region3
    $region8: #{tpu_custom_call.1} parent=1 // loop_exit
      _
    %605 = vsyncpa [#allocation3], 1
    %s606 = scalar_lea.sflag [#allocation3], 1
    %607 = vsyncpa %s606, 1
    %608 = vsyncpa [#allocation4], 1
    %s609 = scalar_lea.sflag [#allocation4], 1
    %610 = vsyncpa %s609, 1
    %611 = vsyncpa [#allocation5], 1
    %s612 = scalar_lea.sflag [#allocation5], 1
    %613 = vsyncpa %s612, 1

</llo_original>
